<compile_context>
chip_gen: v7x
topology: tpu7x:2x2x1
jax: 0.10.0
libtpu: 0.0.40
codegen_flags: <defaults>
</compile_context>

<pallas_src>
import functools

import jax
import jax.numpy as jnp
from jax import lax
from jax.experimental import pallas as pl
from jax.experimental.pallas import tpu as pltpu


_CHUNK_ROWS = 512            # rows per in-kernel sub-chunk (bounds temporaries ~1 MiB)


def _cdiv(a, b):
    return -(-a // b)


def _round_up(v, m):
    return _cdiv(v, m) * m


def _pick_block_budget():
    """(max_block_bytes, vmem_limit_bytes), generation-aware."""
    try:
        vmem_bytes = pltpu.get_tpu_info().vmem_capacity_bytes
    except Exception:
        vmem_bytes = 0  # unknown -> be conservative (v7x-safe)
    if vmem_bytes >= 100 * 1024 * 1024:
        # v5e / v6e: 128 MiB physical VMEM -> 16 MiB blocks, generous limit.
        return 16 * 1024 * 1024, 96 * 1024 * 1024
    # v7x (64 MiB per TC) or unknown: 8 MiB blocks, 2 in x 2 buf = 32 MiB + slack.
    return 8 * 1024 * 1024, 48 * 1024 * 1024


def _js_loss_kernel(x_ref, y_ref, o_ref, *, eps, steps, block_rows, chunk_rows,
                    n_chunks, valid_rows, needs_mask):
    """Per-lane partial sums of (x2-y2)^2 / (x2*y2); 0.5 factor applied outside."""
    p = pl.program_id(0)
    i = pl.program_id(1)
    lanes = x_ref.shape[1]

    # Output block is VMEM-resident across the reduction axis (index map ignores i):
    # zero it on the first step, accumulate directly into it.
    @pl.when(i == 0)
    def _():
        o_ref[...] = jnp.zeros_like(o_ref)

    block_row0 = (p * steps + i) * block_rows  # global row offset of this block

    def chunk_sum(r0):
        xs = x_ref[pl.ds(r0, chunk_rows), :].astype(jnp.float32)
        ys = y_ref[pl.ds(r0, chunk_rows), :].astype(jnp.float32)
        x2 = xs * xs + eps
        y2 = ys * ys + eps
        prod = x2 * y2
        d = x2 - y2
        # 0.5*(x2/y2 + y2/x2) - 1 == (x2 - y2)^2 / (2 * x2 * y2)
        r = pl.reciprocal(prod, approx=True)      # EUP vrcp (own bundle slot)
        r = r * (2.0 - prod * r)                  # one Newton step -> ~f32 accurate
        ret = (d * d) * r                         # global 0.5 applied in wrapper
        if needs_mask:
            # Only ragged shapes reach here; zero contributions from rows past
            # the true row count (the trailing block's over-read is garbage).
            row = lax.broadcasted_iota(jnp.int32, ret.shape, 0)
            ret = jnp.where(row < (valid_rows - (block_row0 + r0)), ret, 0.0)
        return jnp.sum(ret, axis=0, keepdims=True)

    if n_chunks == 1:
        partial = chunk_sum(0)
    else:
        def body(c, acc):
            r0 = pl.multiple_of(c * chunk_rows, chunk_rows)
            return acc + chunk_sum(r0)
        partial = lax.fori_loop(0, n_chunks, body,
                                jnp.zeros((1, lanes), jnp.float32))

    o_ref[0] = o_ref[0] + partial


def js_loss(x, y, eps):
    """Pallas implementation of JS_loss.forward(x, y)."""
    B, C, F, T = x.shape
    N = B * C * F * T
    itemsize = x.dtype.itemsize
    row_mult = max(8, 32 // itemsize)  # min sublane tile: f32->8, bf16->16, int8->32

    # Lane-dense width (multiple of 128) that divides N exactly -> reshape is a
    # free contiguous view, no padding copy.  Prefer a width whose row count is
    # also a multiple of the sublane tile (then no block ever over-reads).
    lanes = None
    for cand in (512, 256, 128):
        if N % cand == 0 and (N // cand) % row_mult == 0:
            lanes = cand
            break
    if lanes is None:
        for cand in (512, 256, 128):
            if N % cand == 0:
                lanes = cand
                break

    if lanes is None:
        # Rare fallback: N not a multiple of 128.  Tiny zero-pad; padded zeros
        # contribute exactly 0 under the (a-b)^2/(2ab) form (x2 == y2 == eps).
        lanes = 128
        n_pad = _round_up(N, lanes)
        x2d = jnp.pad(x.reshape(-1), (0, n_pad - N)).reshape(-1, lanes)
        y2d = jnp.pad(y.reshape(-1), (0, n_pad - N)).reshape(-1, lanes)
    else:
        x2d = x.reshape(-1, lanes)
        y2d = y.reshape(-1, lanes)

    rows = x2d.shape[0]

    max_block_bytes, vmem_limit = _pick_block_budget()
    max_block_rows = (max_block_bytes // (lanes * itemsize)) // _CHUNK_ROWS * _CHUNK_ROWS
    max_block_rows = max(max_block_rows, row_mult)

    # Split across both TensorCores whenever each core gets >= one sublane tile
    # (v7x has 2 TCs; single-TC chips just iterate the parallel axis).
    num_cores = 2 if rows >= 2 * row_mult else 1
    rows_per_core = _cdiv(rows, num_cores)
    steps = _cdiv(rows_per_core, max_block_rows)
    block_rows = _cdiv(rows_per_core, steps)
    if block_rows > _CHUNK_ROWS:
        block_rows = _round_up(block_rows, _CHUNK_ROWS)
        chunk_rows = _CHUNK_ROWS
    else:
        block_rows = _round_up(block_rows, row_mult)
        chunk_rows = block_rows
    n_chunks = block_rows // chunk_rows
    rows_covered = num_cores * steps * block_rows
    needs_mask = rows_covered != rows  # ragged tail -> mask in-kernel, no pad copy

    kernel = functools.partial(
        _js_loss_kernel, eps=float(eps), steps=steps, block_rows=block_rows,
        chunk_rows=chunk_rows, n_chunks=n_chunks, valid_rows=rows,
        needs_mask=needs_mask)

    partials = pl.pallas_call(
        kernel,
        out_shape=jax.ShapeDtypeStruct((num_cores, 1, lanes), jnp.float32),
        grid_spec=pltpu.PrefetchScalarGridSpec(
            num_scalar_prefetch=0,
            grid=(num_cores, steps),
            in_specs=[
                pl.BlockSpec((block_rows, lanes), lambda p, i: (p * steps + i, 0)),
                pl.BlockSpec((block_rows, lanes), lambda p, i: (p * steps + i, 0)),
            ],
            out_specs=pl.BlockSpec((1, 1, lanes), lambda p, i: (p, 0, 0)),
        ),
        compiler_params=pltpu.CompilerParams(
            dimension_semantics=("parallel", "arbitrary"),
            vmem_limit_bytes=vmem_limit,
        ),
    )(x2d, y2d)

    # Tiny final cross-lane reduce; fold the global 0.5 and the torch
    # normalization (/B /T /F, NOT /C) here.
    return 0.5 * jnp.sum(partials) / B / T / F


def js_loss_reference(x, y, eps):
    """Pure-JAX reference for correctness checking."""
    B, C, F, T = x.shape
    xf = x.astype(jnp.float32) ** 2 + eps
    yf = y.astype(jnp.float32) ** 2 + eps
    ret = 0.5 * (xf / yf + yf / xf) - 1.0
    return jnp.sum(ret) / B / T / F


if __name__ == "__main__":
    eps = 1e-6
    B, C, F, T = 2, 4, 16, 16

    key = jax.random.PRNGKey(0)
    kx, ky = jax.random.split(key)
    x = jax.random.normal(kx, (B, C, F, T), dtype=jnp.float32)
    y = jax.random.normal(ky, (B, C, F, T), dtype=jnp.float32)

    out = js_loss(x, y, eps)
    out = jax.block_until_ready(out)

    ref = js_loss_reference(x, y, eps)
    assert jnp.allclose(out, ref, rtol=1e-5, atol=1e-5), (out, ref)

    print("KERNEL_OK")
</pallas_src>

<mosaic_0001>
module attributes {stable_mosaic.version = 11 : i64} {
  func.func @_js_loss_kernel(%arg0: i32, %arg1: i32, %arg2: memref<8x256xf32, #tpu.memory_space<vmem>>, %arg3: memref<8x256xf32, #tpu.memory_space<vmem>>, %arg4: memref<1x1x256xf32, #tpu.memory_space<vmem>>) attributes {dimension_semantics = [#tpu.dimension_semantics<parallel>, #tpu.dimension_semantics<arbitrary>], iteration_bounds = array<i64: 1, 1>, scalar_prefetch = 0 : i64, scratch_operands = 0 : i64, tpu.core_type = #tpu.core_type<tc>, window_params = [{transform_indices = @transform_0, window_bounds = array<i64: 8, 256>}, {transform_indices = @transform_1, window_bounds = array<i64: 8, 256>}, {transform_indices = @transform_2, window_bounds = array<i64: 1, 1, 256>}]} {
    %c0_i32 = arith.constant 0 : i32
    %0 = arith.cmpi eq, %arg1, %c0_i32 : i32
    %1 = arith.extui %0 : i1 to i32
    %c0_i32_0 = arith.constant 0 : i32
    %2 = arith.cmpi ne, %1, %c0_i32_0 : i32
    scf.if %2 {
      %cst_13 = arith.constant 0.000000e+00 : f32
      %28 = vector.broadcast %cst_13 : f32 to vector<1x1x256xf32>
      %c0_14 = arith.constant 0 : index
      %c0_15 = arith.constant 0 : index
      %c0_16 = arith.constant 0 : index
      %29 = vector.load %arg4[%c0_14, %c0_15, %c0_16] : memref<1x1x256xf32, #tpu.memory_space<vmem>>, vector<1x1x256xf32>
      tpu.vector_store %arg4[%c0_14, %c0_15, %c0_16], %28 {strides = array<i32>} : memref<1x1x256xf32, #tpu.memory_space<vmem>>, vector<1x1x256xf32>,
    } else {
    }
    %c0 = arith.constant 0 : index
    %c0_1 = arith.constant 0 : index
    %3 = vector.load %arg2[%c0, %c0_1] : memref<8x256xf32, #tpu.memory_space<vmem>>, vector<8x256xf32>
    %c0_2 = arith.constant 0 : index
    %c0_3 = arith.constant 0 : index
    %4 = vector.load %arg3[%c0_2, %c0_3] : memref<8x256xf32, #tpu.memory_space<vmem>>, vector<8x256xf32>
    %5 = arith.mulf %3, %3 : vector<8x256xf32>
    %cst = arith.constant 9.99999997E-7 : f32
    %6 = vector.broadcast %cst : f32 to vector<8x256xf32>
    %7 = arith.addf %5, %6 : vector<8x256xf32>
    %8 = arith.mulf %4, %4 : vector<8x256xf32>
    %cst_4 = arith.constant 9.99999997E-7 : f32
    %9 = vector.broadcast %cst_4 : f32 to vector<8x256xf32>
    %10 = arith.addf %8, %9 : vector<8x256xf32>
    %11 = arith.mulf %7, %10 : vector<8x256xf32>
    %12 = arith.subf %7, %10 : vector<8x256xf32>
    %13 = tpu.reciprocal %11 {approx = true} : vector<8x256xf32> -> vector<8x256xf32>
    %14 = arith.mulf %11, %13 : vector<8x256xf32>
    %cst_5 = arith.constant 2.000000e+00 : f32
    %15 = vector.broadcast %cst_5 : f32 to vector<8x256xf32>
    %16 = arith.subf %15, %14 : vector<8x256xf32>
    %17 = arith.mulf %13, %16 : vector<8x256xf32>
    %18 = arith.mulf %12, %12 : vector<8x256xf32>
    %19 = arith.mulf %18, %17 : vector<8x256xf32>
    %cst_6 = arith.constant dense<0.000000e+00> : vector<256xf32>
    %20 = vector.multi_reduction <add>, %19, %cst_6 [0] : vector<8x256xf32> to vector<256xf32>
    %21 = vector.shape_cast %20 : vector<256xf32> to vector<1x256xf32>
    %c0_7 = arith.constant 0 : index
    %c0_8 = arith.constant 0 : index
    %c0_9 = arith.constant 0 : index
    %22 = vector.load %arg4[%c0_7, %c0_8, %c0_9] : memref<1x1x256xf32, #tpu.memory_space<vmem>>, vector<1x1x256xf32>
    %23 = vector.shape_cast %22 : vector<1x1x256xf32> to vector<1x256xf32>
    %24 = arith.addf %23, %21 : vector<1x256xf32>
    %c0_10 = arith.constant 0 : index
    %c0_11 = arith.constant 0 : index
    %c0_12 = arith.constant 0 : index
    %25 = vector.load %arg4[%c0_10, %c0_11, %c0_12] : memref<1x1x256xf32, #tpu.memory_space<vmem>>, vector<1x1x256xf32>
    %26 = vector.shape_cast %25 : vector<1x1x256xf32> to vector<1x256xf32>
    %27 = vector.shape_cast %24 : vector<1x256xf32> to vector<1x1x256xf32>
    tpu.vector_store %arg4[%c0_10, %c0_11, %c0_12], %27 {strides = array<i32>} : memref<1x1x256xf32, #tpu.memory_space<vmem>>, vector<1x1x256xf32>,
    return
  }
  func.func @transform_0(%arg0: i32, %arg1: i32) -> (i32, i32) {
    %c1_i32 = arith.constant 1 : i32
    %0 = arith.muli %arg0, %c1_i32 : i32
    %1 = arith.addi %0, %arg1 : i32
    %c0_i32 = arith.constant 0 : i32
    %c0_i32_0 = arith.constant 0 : i32
    return %1, %c0_i32 : i32, i32
  }
  func.func @transform_1(%arg0: i32, %arg1: i32) -> (i32, i32) {
    %c1_i32 = arith.constant 1 : i32
    %0 = arith.muli %arg0, %c1_i32 : i32
    %1 = arith.addi %0, %arg1 : i32
    %c0_i32 = arith.constant 0 : i32
    %c0_i32_0 = arith.constant 0 : i32
    return %1, %c0_i32 : i32, i32
  }
  func.func @transform_2(%arg0: i32, %arg1: i32) -> (i32, i32, i32) {
    %c0_i32 = arith.constant 0 : i32
    %c0_i32_0 = arith.constant 0 : i32
    %c0_i32_1 = arith.constant 0 : i32
    return %arg0, %c0_i32, %c0_i32_0 : i32, i32, i32
  }
}

</mosaic_0001>

<llo_original>
// kernel: tpu_custom_call.1
$region0: #{tpu_custom_call.1}
  #allocation0 [shape = 'u32[]', space=smem, size = 0x4, offset = 0x4, fixed_abs, tag = 'smem constant byte address 0x4 - core index']
  #allocation1 [shape = 'u32[144,128]{1,0:T(1,128)}', space=vmem, size = 0x12000, scoped, tag = 'internal scratch']
  %s0 = inlined_call_operand.hbm [shape: f32[8,256], index: 0, kind: input, shape index: {}]
  %s1 = inlined_call_operand.hbm [shape: f32[8,256], index: 1, kind: input, shape index: {}]
  %s2 = inlined_call_operand.hbm [shape: f32[1,1,256], index: 2, kind: output, shape index: {}]
  %s3 = sld [smem:[#allocation0]]
  $region30: #{tpu_custom_call.1} parent=0
    _
  %s5 = ssub.s32 1, %s3
  %s6 = scalar_select 0, %s5, %s3
  $region1: #{tpu_custom_call.1} parent=0
    #allocation2 [shape = 'u8[8192]{0}', space=vmem, size = 0x2000, scoped, tag = 'input window, operand 0, single buffered']
    #allocation3 [shape = 's32[1]{0}', space=sflag, size = 0x4, scoped, tag = 'scoped memory for tpu_custom_call.1']
    #allocation4 [shape = 's32[1]{0}', space=sflag, size = 0x4, scoped, tag = 'scoped memory for tpu_custom_call.1']
    #allocation5 [shape = 'u8[8192]{0}', space=vmem, size = 0x2000, scoped, tag = 'input window, operand 1, single buffered']
    #allocation6 [shape = 's32[1]{0}', space=sflag, size = 0x4, scoped, tag = 'scoped memory for tpu_custom_call.1']
    #allocation7 [shape = 'u8[1024]{0}', space=vmem, size = 0x400, scoped, tag = 'output window, operand 0, single buffered']
    %7 = vsyncpa [#allocation3], 0
    %8 = vsyncpa [#allocation6], 0
    %9 = vsyncpa [#allocation4], 0
    // Predicated region
    $region2: #{tpu_custom_call.1} parent=1 // pred_check
      _
    $region3: #{tpu_custom_call.1} parent=1 // pred_check_branch
      %11 = sbr.rel (0) target = $region5
    $region4: #{tpu_custom_call.1} parent=1 // pred_region
      %s12 = sadd.s32 0, 0
      %s14 = ssub.s32 256, 256
      %15 = vsyncadd [#allocation3], %s14
      %s16 = smul.addr %s12, 2
      %s17 = smul.addr %s16, 128
      %s18 = scalar_lea.hbm %s0, %s17
      %s20 = sshll.u32 [#allocation2], 4
      %s21 = int_to_ptr.vmem [resolvable:$true] %s20
      %23 = dma.hbm_to_vmem [thread:$0]  %s18, 256, %s21, [#allocation3]
    $region5: #{tpu_custom_call.1} parent=1 // pred_fallthru
      _
    // Predicated region
    $region6: #{tpu_custom_call.1} parent=1 // pred_check
      _
    $region7: #{tpu_custom_call.1} parent=1 // pred_check_branch
      %25 = sbr.rel (0) target = $region9
    $region8: #{tpu_custom_call.1} parent=1 // pred_region
      %s26 = sadd.s32 0, 0
      %s28 = ssub.s32 256, 256
      %29 = vsyncadd [#allocation6], %s28
      %s30 = smul.addr %s26, 2
      %s31 = smul.addr %s30, 128
      %s32 = scalar_lea.hbm %s1, %s31
      %s34 = sshll.u32 [#allocation5], 4
      %s35 = int_to_ptr.vmem [resolvable:$true] %s34
      %37 = dma.hbm_to_vmem [thread:$0]  %s32, 256, %s35, [#allocation6]
    $region9: #{tpu_custom_call.1} parent=1 // pred_fallthru
      _
    // Predicated region
    $region10: #{tpu_custom_call.1} parent=1 // pred_check
      _
    $region11: #{tpu_custom_call.1} parent=1 // pred_check_branch
      %39 = sbr.rel (0) target = $region13
    $region12: #{tpu_custom_call.1} parent=1 // pred_region
      %40 = dma.done [#allocation3], 256
    $region13: #{tpu_custom_call.1} parent=1 // pred_fallthru
      _
    // Predicated region
    $region14: #{tpu_custom_call.1} parent=1 // pred_check
      _
    $region15: #{tpu_custom_call.1} parent=1 // pred_check_branch
      %42 = sbr.rel (0) target = $region17
    $region16: #{tpu_custom_call.1} parent=1 // pred_region
      %43 = dma.done [#allocation6], 256
    $region17: #{tpu_custom_call.1} parent=1 // pred_fallthru
      _
    %s44 = sadd.s32 0, 0
    %s45 = sadd.s32 0, 0
    %p46 = scmp.eq.s32.totalorder 0, 0
    // Predicated region
    $region18: #{tpu_custom_call.1} parent=1 // pred_check
      %p47 = pneg %p46
    $region19: #{tpu_custom_call.1} parent=1 // pred_check_branch
      %49 = sbr.rel (%p47) target = $region21
    $region20: #{tpu_custom_call.1} parent=1 // pred_region
      %v50 = vlaneseq
      %vm51 = vcmp.ge.s32.totalorder %v50, 0
      %vm52 = vcmp.lt.s32.totalorder %v50, 256
      %vm53 = vmand %vm51, %vm52
      %54 = vst.msk [vmem:[#allocation7] sm:$0x3] %vm53, 0.0
    $region21: #{tpu_custom_call.1} parent=1 // pred_fallthru
      _
    %v55 = vld [vmem:[#allocation2] sm:$0xff]
    %v56 = vld [vmem:[#allocation2 + $0x8] sm:$0xff]
    %v57 = vld [vmem:[#allocation5] sm:$0xff]
    %v58 = vld [vmem:[#allocation5 + $0x8] sm:$0xff]
    %v59 = vmul.f32 %v55, %v55
    %v60 = vmul.f32 %v56, %v56
    %v61 = vadd.f32 %v59, 1e-06
    %v62 = vadd.f32 %v60, 1e-06
    %v63 = vmul.f32 %v57, %v57
    %v64 = vmul.f32 %v58, %v58
    %v65 = vadd.f32 %v63, 1e-06
    %v66 = vadd.f32 %v64, 1e-06
    %v67 = vmul.f32 %v61, %v65
    %v68 = vmul.f32 %v62, %v66
    %v69 = vsub.f32 %v61, %v65
    %v70 = vsub.f32 %v62, %v66
    %v71 = vrcp.pop %v67
    %v72 = vrcp.pop %v68
    %v73 = vmul.f32 %v67, %v71
    %v74 = vmul.f32 %v68, %v72
    %v75 = vsub.f32 2.0, %v73
    %v76 = vsub.f32 2.0, %v74
    %v77 = vmul.f32 %v71, %v75
    %v78 = vmul.f32 %v72, %v76
    %v79 = vmul.f32 %v69, %v69
    %v80 = vmul.f32 %v70, %v70
    %v81 = vmul.f32 %v79, %v77
    %v82 = vmul.f32 %v80, %v78
    %v83 = vrot.slane %v81, 4
    %v84 = vadd.f32 %v81, %v83
    %v85 = vrot.slane %v84, 2
    %v86 = vadd.f32 %v84, %v85
    %v87 = vrot.slane %v86, 1
    %v88 = vadd.f32 %v86, %v87
    %v89 = vrot.slane %v82, 4
    %v90 = vadd.f32 %v82, %v89
    %v91 = vrot.slane %v90, 2
    %v92 = vadd.f32 %v90, %v91
    %v93 = vrot.slane %v92, 1
    %v94 = vadd.f32 %v92, %v93
    %v95 = vld [vmem:[#allocation7] sm:$0x3]
    %v98 = vcombine.low %v88, %v94
    %v100 = vunpack.c.l.s4 1966171168
    %v101 = vunpack.c.0.s8 %v100
    %v102 = vlaneseq
    %v103 = vshrl.u32 %v102, 7
    %v104 = vsub.s32 %v101, %v103
    %v105 = vrot.slane %v98, %v104
    %v107 = vunpack.c.l.s4 1966171168
    %v108 = vunpack.c.0.s8 %v107
    %v109 = vlaneseq
    %v110 = vshrl.u32 %v109, 7
    %v111 = vsub.s32 %v108, %v110
    %v112 = vrot.slane %v105, %v111
    %v114 = vadd.f32 %v95, %v112
    %v115 = vlaneseq
    %vm116 = vcmp.ge.s32.totalorder %v115, 0
    %vm117 = vcmp.lt.s32.totalorder %v115, 256
    %vm118 = vmand %vm116, %vm117
    %119 = vst.msk [vmem:[#allocation7] sm:$0x3] %vm118, %v114
    // Predicated region
    $region22: #{tpu_custom_call.1} parent=1 // pred_check
      _
    $region23: #{tpu_custom_call.1} parent=1 // pred_check_branch
      %121 = sbr.rel (0) target = $region25
    $region24: #{tpu_custom_call.1} parent=1 // pred_region
      %s123 = ssub.s32 32, 32
      %124 = vsyncadd [#allocation4], %s123
      %s126 = sshll.u32 [#allocation7], 4
      %s127 = int_to_ptr.vmem [resolvable:$true] %s126
      %129 = dma.vmem_to_hbm [thread:$0]  %s127, 32, %s2, [#allocation4]
    $region25: #{tpu_custom_call.1} parent=1 // pred_fallthru
      _
    // Predicated region
    $region26: #{tpu_custom_call.1} parent=1 // pred_check
      _
    $region27: #{tpu_custom_call.1} parent=1 // pred_check_branch
      %131 = sbr.rel (0) target = $region29
    $region28: #{tpu_custom_call.1} parent=1 // pred_region
      %132 = dma.done [#allocation4], 32
    $region29: #{tpu_custom_call.1} parent=1 // pred_fallthru
      _
    %133 = vsyncpa [#allocation3], 1
    %134 = vsyncpa [#allocation6], 1
    %135 = vsyncpa [#allocation4], 1

</llo_original>
